<compile_context>
chip_gen: v5e
topology: v5e:2x2
jax: 0.10.0
libtpu: 0.0.40
codegen_flags: <defaults>
</compile_context>

<pallas_src>
import functools

import jax
import jax.numpy as jnp
from jax import lax
from jax.experimental import pallas as pl
from jax.experimental.pallas import tpu as pltpu


def _ce_kernel(x_ref, t_ref, out_ref, acc_ref, *, hw, tile):
    j = pl.program_id(1)

    @pl.when(j == 0)
    def _():
        acc_ref[...] = jnp.zeros_like(acc_ref)

    x = x_ref[0].astype(jnp.float32)     # (C, TILE): classes on sublanes, pixels on lanes
    t = t_ref[0]                         # (1, TILE) int32 targets

    # Numerically-stable log-softmax over the class (sublane) axis.
    m = jnp.max(x, axis=0, keepdims=True)                         # (1, TILE)
    z = x - m
    lse = jnp.log(jnp.sum(jnp.exp(z), axis=0, keepdims=True))     # (1, TILE)

    # "Gather" z[target] per pixel via a one-hot compare on the class axis.
    cls = lax.broadcasted_iota(jnp.int32, z.shape, 0)             # (C, TILE)
    z_t = jnp.sum(jnp.where(cls == t, z, 0.0), axis=0, keepdims=True)

    nll = lse - z_t                      # -log_softmax(x)[target], (1, TILE)

    # Mask pixels past the end of the (possibly ragged) last tile.
    pix = j * tile + lax.broadcasted_iota(jnp.int32, (1, tile), 1)
    acc_ref[...] += jnp.where(pix < hw, nll, 0.0)

    @pl.when(j == pl.num_programs(1) - 1)
    def _():
        # Single cross-lane reduce per image; splat into the lane-dense block.
        out_ref[...] = jnp.broadcast_to(jnp.sum(acc_ref[...]), (1, 1, 128))


def _choose_tile(hw, c):
    """Pixels per block (lane extent): multiple of 128 unless it spans all of HW."""
    padded_c = -(-c // 8) * 8
    budget = 10 * 1024 * 1024  # padded-VMEM budget: safe under v5e/v6e/v7x default scoped VMEM
    # padded bytes per lane: 2 logits buffers (padded_c sublanes, f32 accounting)
    # + 2 int32 target buffers (padded to 8 sublanes) + f32 accumulator (8 sublanes)
    per_lane = 4 * (2 * padded_c + 2 * 8 + 8)
    tile = max(128, (budget // per_lane) // 128 * 128)
    return hw if hw <= tile else tile


@functools.partial(jax.jit, static_argnames=("size_average",))
def cross_entropy(inputs, target, size_average=False):
    """Pallas equivalent of CrossEntropy.forward.

    inputs: (N, C, H, W) float logits (or already (R, C)).
    target: (N, H, W) integer class indices (or (R,)).
    Returns scalar float32: sum (or mean) of -log_softmax(inputs)[target].
    """
    x = inputs
    if x.ndim > 2:
        n, c = x.shape[0], x.shape[1]
        x = x.reshape(n, c, -1)                       # (N, C, HW): free contiguous reshape
        t = target.reshape(n, 1, -1).astype(jnp.int32)
    else:
        # Cold path for plain (R, C) logits: one "image" with R pixels.
        r, c = x.shape
        x = jnp.transpose(x).reshape(1, c, r)
        t = target.reshape(1, 1, r).astype(jnp.int32)

    n_img, n_cls, hw = x.shape
    tile = _choose_tile(hw, n_cls)
    n_tiles = pl.cdiv(hw, tile)

    kernel = functools.partial(_ce_kernel, hw=hw, tile=tile)
    partial_sums = pl.pallas_call(
        kernel,
        out_shape=jax.ShapeDtypeStruct((n_img, 1, 128), jnp.float32),
        grid_spec=pltpu.PrefetchScalarGridSpec(
            num_scalar_prefetch=0,
            grid=(n_img, n_tiles),
            in_specs=[
                pl.BlockSpec((1, n_cls, tile), lambda i, j: (i, 0, j)),
                pl.BlockSpec((1, 1, tile), lambda i, j: (i, 0, j)),
            ],
            out_specs=pl.BlockSpec((1, 1, 128), lambda i, j: (i, 0, 0)),
            scratch_shapes=[pltpu.VMEM((1, tile), jnp.float32)],
        ),
        compiler_params=pltpu.CompilerParams(
            dimension_semantics=("parallel", "arbitrary")),
    )(x, t)

    total = jnp.sum(partial_sums[:, 0, 0])
    if size_average:
        return total / jnp.float32(n_img * hw)
    return total


if __name__ == "__main__":
    key = jax.random.PRNGKey(0)
    k1, k2 = jax.random.split(key)

    N, C, H, W = 2, 4, 16, 16
    logits = jax.random.normal(k1, (N, C, H, W), dtype=jnp.float32)
    target = jax.random.randint(k2, (N, H, W), 0, C, dtype=jnp.int32)

    loss_sum = jax.block_until_ready(cross_entropy(logits, target, size_average=False))
    loss_mean = jax.block_until_ready(cross_entropy(logits, target, size_average=True))

    # Pure-JAX reference (mirrors the PyTorch view/transpose/reshape exactly).
    x2d = jnp.transpose(logits.reshape(N, C, -1), (0, 2, 1)).reshape(-1, C)
    logp = jax.nn.log_softmax(x2d, axis=-1)
    nll = -jnp.take_along_axis(logp, target.reshape(-1, 1), axis=1)[:, 0]
    assert jnp.allclose(loss_sum, jnp.sum(nll), rtol=1e-5, atol=1e-4), (loss_sum, jnp.sum(nll))
    assert jnp.allclose(loss_mean, jnp.mean(nll), rtol=1e-5, atol=1e-4), (loss_mean, jnp.mean(nll))

    print("KERNEL_OK")
</pallas_src>

<mosaic_0001>
module attributes {stable_mosaic.version = 11 : i64} {
  func.func @_ce_kernel(%arg0: i32, %arg1: i32, %arg2: memref<1x4x256xf32, #tpu.memory_space<vmem>>, %arg3: memref<1x1x256xi32, #tpu.memory_space<vmem>>, %arg4: memref<1x1x128xf32, #tpu.memory_space<vmem>>, %arg5: memref<1x256xf32, #tpu.memory_space<vmem>>) attributes {dimension_semantics = [#tpu.dimension_semantics<parallel>, #tpu.dimension_semantics<arbitrary>], iteration_bounds = array<i64: 2, 1>, scalar_prefetch = 0 : i64, scratch_operands = 1 : i64, tpu.core_type = #tpu.core_type<tc>, window_params = [{transform_indices = @transform_0, window_bounds = array<i64: 1, 4, 256>}, {transform_indices = @transform_1, window_bounds = array<i64: 1, 1, 256>}, {transform_indices = @transform_2, window_bounds = array<i64: 1, 1, 128>}]} {
    %c0_i32 = arith.constant 0 : i32
    %0 = arith.cmpi eq, %arg1, %c0_i32 : i32
    %1 = arith.extui %0 : i1 to i32
    %c0_i32_0 = arith.constant 0 : i32
    %2 = arith.cmpi ne, %1, %c0_i32_0 : i32
    scf.if %2 {
      %cst_17 = arith.constant 0.000000e+00 : f32
      %37 = vector.broadcast %cst_17 : f32 to vector<1x256xf32>
      %c0_18 = arith.constant 0 : index
      %c0_19 = arith.constant 0 : index
      %38 = vector.load %arg5[%c0_18, %c0_19] : memref<1x256xf32, #tpu.memory_space<vmem>>, vector<1x256xf32>
      tpu.vector_store %arg5[%c0_18, %c0_19], %37 {strides = array<i32>} : memref<1x256xf32, #tpu.memory_space<vmem>>, vector<1x256xf32>,
    } else {
    }
    %c0 = arith.constant 0 : index
    %c0_1 = arith.constant 0 : index
    %c0_2 = arith.constant 0 : index
    %3 = vector.load %arg2[%c0, %c0_1, %c0_2] : memref<1x4x256xf32, #tpu.memory_space<vmem>>, vector<1x4x256xf32>
    %4 = vector.shape_cast %3 : vector<1x4x256xf32> to vector<4x256xf32>
    %c0_3 = arith.constant 0 : index
    %c0_4 = arith.constant 0 : index
    %c0_5 = arith.constant 0 : index
    %5 = vector.load %arg3[%c0_3, %c0_4, %c0_5] : memref<1x1x256xi32, #tpu.memory_space<vmem>>, vector<1x1x256xi32>
    %6 = vector.shape_cast %5 : vector<1x1x256xi32> to vector<1x256xi32>
    %cst = arith.constant dense<0xFF800000> : vector<256xf32>
    %7 = vector.multi_reduction <maximumf>, %4, %cst [0] : vector<4x256xf32> to vector<256xf32>
    %8 = vector.shape_cast %7 : vector<256xf32> to vector<1x256xf32>
    %9 = vector.broadcast %8 : vector<1x256xf32> to vector<4x256xf32>
    %10 = arith.subf %4, %9 : vector<4x256xf32>
    %11 = math.exp %10 : vector<4x256xf32>
    %cst_6 = arith.constant dense<0.000000e+00> : vector<256xf32>
    %12 = vector.multi_reduction <add>, %11, %cst_6 [0] : vector<4x256xf32> to vector<256xf32>
    %13 = vector.shape_cast %12 : vector<256xf32> to vector<1x256xf32>
    %14 = math.log %13 : vector<1x256xf32>
    %15 = tpu.iota {dimensions = array<i32: 0>} : vector<4x256xi32>
    %16 = vector.broadcast %6 : vector<1x256xi32> to vector<4x256xi32>
    %17 = arith.cmpi eq, %15, %16 : vector<4x256xi32>
    %cst_7 = arith.constant 0.000000e+00 : f32
    %18 = vector.broadcast %cst_7 : f32 to vector<4x256xf32>
    %19 = arith.select %17, %10, %18 : vector<4x256xi1>, vector<4x256xf32>
    %cst_8 = arith.constant dense<0.000000e+00> : vector<256xf32>
    %20 = vector.multi_reduction <add>, %19, %cst_8 [0] : vector<4x256xf32> to vector<256xf32>
    %21 = vector.shape_cast %20 : vector<256xf32> to vector<1x256xf32>
    %22 = arith.subf %14, %21 : vector<1x256xf32>
    %c256_i32 = arith.constant 256 : i32
    %23 = arith.muli %arg1, %c256_i32 : i32
    %24 = tpu.iota {dimensions = array<i32: 1>} : vector<1x256xi32>
    %25 = vector.broadcast %23 : i32 to vector<1x256xi32>
    %26 = arith.addi %25, %24 : vector<1x256xi32>
    %c0_9 = arith.constant 0 : index
    %c0_10 = arith.constant 0 : index
    %27 = vector.load %arg5[%c0_9, %c0_10] : memref<1x256xf32, #tpu.memory_space<vmem>>, vector<1x256xf32>
    %c256_i32_11 = arith.constant 256 : i32
    %28 = vector.broadcast %c256_i32_11 : i32 to vector<1x256xi32>
    %29 = arith.cmpi slt, %26, %28 : vector<1x256xi32>
    %cst_12 = arith.constant 0.000000e+00 : f32
    %30 = vector.broadcast %cst_12 : f32 to vector<1x256xf32>
    %31 = arith.select %29, %22, %30 : vector<1x256xi1>, vector<1x256xf32>
    %32 = arith.addf %27, %31 : vector<1x256xf32>
    %c0_13 = arith.constant 0 : index
    %c0_14 = arith.constant 0 : index
    %33 = vector.load %arg5[%c0_13, %c0_14] : memref<1x256xf32, #tpu.memory_space<vmem>>, vector<1x256xf32>
    tpu.vector_store %arg5[%c0_13, %c0_14], %32 {strides = array<i32>} : memref<1x256xf32, #tpu.memory_space<vmem>>, vector<1x256xf32>,
    %c0_i32_15 = arith.constant 0 : i32
    %34 = arith.cmpi eq, %arg1, %c0_i32_15 : i32
    %35 = arith.extui %34 : i1 to i32
    %c0_i32_16 = arith.constant 0 : i32
    %36 = arith.cmpi ne, %35, %c0_i32_16 : i32
    scf.if %36 {
      %c0_17 = arith.constant 0 : index
      %c0_18 = arith.constant 0 : index
      %37 = vector.load %arg5[%c0_17, %c0_18] : memref<1x256xf32, #tpu.memory_space<vmem>>, vector<1x256xf32>
      %38 = vector.shape_cast %37 : vector<1x256xf32> to vector<1x1x256xf32>
      %cst_19 = arith.constant dense<0.000000e+00> : vector<1xf32>
      %39 = vector.multi_reduction <add>, %38, %cst_19 [1, 2] : vector<1x1x256xf32> to vector<1xf32>
      %40 = vector.shape_cast %39 : vector<1xf32> to vector<1x1x1xf32>
      %41 = vector.extract %40[0, 0, 0] : f32 from vector<1x1x1xf32>
      %42 = vector.broadcast %41 : f32 to vector<1x1x128xf32>
      %c0_20 = arith.constant 0 : index
      %c0_21 = arith.constant 0 : index
      %c0_22 = arith.constant 0 : index
      %43 = vector.load %arg4[%c0_20, %c0_21, %c0_22] : memref<1x1x128xf32, #tpu.memory_space<vmem>>, vector<1x1x128xf32>
      tpu.vector_store %arg4[%c0_20, %c0_21, %c0_22], %42 {strides = array<i32>} : memref<1x1x128xf32, #tpu.memory_space<vmem>>, vector<1x1x128xf32>,
    } else {
    }
    return
  }
  func.func @transform_0(%arg0: i32, %arg1: i32) -> (i32, i32, i32) {
    %c0_i32 = arith.constant 0 : i32
    %c0_i32_0 = arith.constant 0 : i32
    return %arg0, %c0_i32, %arg1 : i32, i32, i32
  }
  func.func @transform_1(%arg0: i32, %arg1: i32) -> (i32, i32, i32) {
    %c0_i32 = arith.constant 0 : i32
    %c0_i32_0 = arith.constant 0 : i32
    return %arg0, %c0_i32, %arg1 : i32, i32, i32
  }
  func.func @transform_2(%arg0: i32, %arg1: i32) -> (i32, i32, i32) {
    %c0_i32 = arith.constant 0 : i32
    %c0_i32_0 = arith.constant 0 : i32
    %c0_i32_1 = arith.constant 0 : i32
    return %arg0, %c0_i32, %c0_i32_0 : i32, i32, i32
  }
}

</mosaic_0001>

<llo_original>
// kernel: cross_entropy.1
$region0: #{cross_entropy.1}
  #allocation0 [shape = 'u32[]', space=smem, size = 0x4, offset = 0x4, fixed_abs, tag = 'smem constant byte address 0x4 - core index']
  #allocation1 [shape = 'u32[72,128]{1,0:T(1,128)}', space=vmem, size = 0x9000, scoped, tag = 'internal scratch']
  #allocation2 [shape = 'f32[1,256]{1,0:T(1,128)}', space=vmem, size = 0x400, scoped, tag = 'scratch operand']
  %s0 = inlined_call_operand.vmem [shape: f32[2,4,256], index: 0, kind: input, shape index: {}]
  %s1 = inlined_call_operand.vmem [shape: s32[2,1,256], index: 1, kind: input, shape index: {}]
  %s2 = inlined_call_operand.vmem [shape: f32[2,1,128], index: 2, kind: output, shape index: {}]
  %s3 = sld [smem:[#allocation0]]
  $region49: #{cross_entropy.1} parent=0
    _
  %s5 = ssub.s32 1, %s3
  %s6 = scalar_select 0, %s5, %s3
  loop: start=0, step=1, limit=4
  $region2: #{cross_entropy.1} parent=0 // loop_pre_header
    _
  $region3: #{cross_entropy.1} parent=0 // loop_header
    %s8 = sphi 0, %s12
    %p9 = scmp.ge.s32.totalorder %s8, 4
    %s15 = sphi 0, %s27
    %s16 = sphi 0, %s23
    %s17 = sphi 0, %s15
    %s18 = sphi 0, %s16
    %s19 = sphi 0, %s17
    %s20 = sphi 0, %s18
    %s32 = sphi 0, %s34
    %s35 = sphi 0, %s32
    %s36 = sphi 0, %s35
    %s52 = sphi 0, %s36
    %s60 = sphi 0, %s62
    %s63 = sphi 0, %s60
    %s64 = sphi 0, %s63
    %s80 = sphi 0, %s64
    %s86 = sphi 0, %s88
    %s89 = sphi 0, %s86
    %s90 = sphi 0, %s89
    %s106 = sphi 0, %s90
  $region4: #{cross_entropy.1} parent=0 // loop_header_branch
    %11 = sbr.rel (%p9) target = $region8
  $region5: #{cross_entropy.1} parent=0 // loop_body
    %s13 = ssub.s32 %s8, 1
    %s14 = ssub.s32 %s8, 2
    %s21 = sadd.s32 1, %s16
    %p22 = scmp.ge.s32.totalorder %s21, 1
    %s23 = scalar_select %p22, 0, %s21
    %s24 = sadd.s32 1, %s15
    %s25 = scalar_select %p22, %s24, %s15
    %p26 = scmp.ge.s32.totalorder %s25, 2
    %s27 = scalar_select %p26, 0, %s25
    %s28 = ssub.s32 %s15, %s27
    %s29 = ssub.s32 %s16, %s23
    %s30 = sor.u32 %s28, %s29
    %p31 = scmp.eq.s32.totalorder %s30, 0
    %s33 = sadd.s32 %s32, 1
    %s34 = scalar_select %p31, %s32, %s33
    %p37 = pneg %p31
    %p38 = scmp.eq.s32.totalorder %s8, 1
    %p39 = por %p37, %p38
    %p40 = scmp.ne.s32.totalorder %s32, %s35
    %p41 = scmp.eq.s32.totalorder %s8, 0
    %p42 = por %p40, %p41
    %p43 = scmp.ne.s32.totalorder %s32, %s35
    %p44 = scmp.eq.s32.totalorder %s13, 1
    %p45 = por %p43, %p44
    %p46 = scmp.ne.s32.totalorder %s35, %s36
    %p47 = scmp.eq.s32.totalorder %s13, 0
    %p48 = por %p46, %p47
    %p49 = scmp.ne.s32.totalorder %s35, %s36
    %p50 = scmp.eq.s32.totalorder %s14, 1
    %p51 = por %p49, %p50
    %p53 = scmp.ne.s32.totalorder %s36, %s52
    %p54 = scmp.eq.s32.totalorder %s14, 0
    %p55 = por %p53, %p54
    %s56 = ssub.s32 %s15, %s27
    %s57 = ssub.s32 %s16, %s23
    %s58 = sor.u32 %s56, %s57
    %p59 = scmp.eq.s32.totalorder %s58, 0
    %s61 = sadd.s32 %s60, 1
    %s62 = scalar_select %p59, %s60, %s61
    %p65 = pneg %p59
    %p66 = scmp.eq.s32.totalorder %s8, 1
    %p67 = por %p65, %p66
    %p68 = scmp.ne.s32.totalorder %s60, %s63
    %p69 = scmp.eq.s32.totalorder %s8, 0
    %p70 = por %p68, %p69
    %p71 = scmp.ne.s32.totalorder %s60, %s63
    %p72 = scmp.eq.s32.totalorder %s13, 1
    %p73 = por %p71, %p72
    %p74 = scmp.ne.s32.totalorder %s63, %s64
    %p75 = scmp.eq.s32.totalorder %s13, 0
    %p76 = por %p74, %p75
    %p77 = scmp.ne.s32.totalorder %s63, %s64
    %p78 = scmp.eq.s32.totalorder %s14, 1
    %p79 = por %p77, %p78
    %p81 = scmp.ne.s32.totalorder %s64, %s80
    %p82 = scmp.eq.s32.totalorder %s14, 0
    %p83 = por %p81, %p82
    %s84 = ssub.s32 %s15, %s27
    %p85 = scmp.eq.s32.totalorder %s84, 0
    %s87 = sadd.s32 %s86, 1
    %s88 = scalar_select %p85, %s86, %s87
    %p91 = pneg %p85
    %p92 = scmp.eq.s32.totalorder %s8, 1
    %p93 = por %p91, %p92
    %p94 = scmp.ne.s32.totalorder %s86, %s89
    %p95 = scmp.eq.s32.totalorder %s8, 0
    %p96 = por %p94, %p95
    %p97 = scmp.ne.s32.totalorder %s86, %s89
    %p98 = scmp.eq.s32.totalorder %s13, 1
    %p99 = por %p97, %p98
    %p100 = scmp.ne.s32.totalorder %s89, %s90
    %p101 = scmp.eq.s32.totalorder %s13, 0
    %p102 = por %p100, %p101
    %p103 = scmp.ne.s32.totalorder %s89, %s90
    %p104 = scmp.eq.s32.totalorder %s14, 1
    %p105 = por %p103, %p104
    %p107 = scmp.ne.s32.totalorder %s90, %s106
    %p108 = scmp.eq.s32.totalorder %s14, 0
    %p109 = por %p107, %p108
    %p110 = scmp.le.s32.totalorder 1, %s8
    %p111 = scmp.lt.s32.totalorder %s8, 3
    %p112 = pnand %p110, %p111
    %p113 = pneg %p112
    // Predicated region
    $region9: #{cross_entropy.1} parent=5 // pred_check
      _
    $region10: #{cross_entropy.1} parent=5 // pred_check_branch
      %115 = sbr.rel (%p112) target = $region12
    $region11: #{cross_entropy.1} parent=5 // pred_region
      %s116 = ssub.s32 %s8, 1
    $region12: #{cross_entropy.1} parent=5 // pred_fallthru
      _
    %p117 = scmp.lt.s32.totalorder %s8, 2
    // Predicated region
    $region13: #{cross_entropy.1} parent=5 // pred_check
      %p118 = pneg %p117
    $region14: #{cross_entropy.1} parent=5 // pred_check_branch
      %120 = sbr.rel (%p118) target = $region16
    $region15: #{cross_entropy.1} parent=5 // pred_region
      // Predicated region
      $region17: #{cross_entropy.1} parent=15 // pred_check
        %p121 = pneg %p42
      $region18: #{cross_entropy.1} parent=15 // pred_check_branch
        %123 = sbr.rel (%p121) target = $region20
      $region19: #{cross_entropy.1} parent=15 // pred_region
        %s124 = smul.u32 2, %s16
        %p125 = scmp.lt.s32.totalorder %s15, 1
        %s126 = scalar_select %p125, %s15, 1
        %p127 = scmp.lt.s32.totalorder %s124, 1
        %s128 = scalar_select %p127, %s124, 1
        %s129 = smul.addr %s126, 2
        %s130 = sadd.s32 %s128, %s129
        %s131 = smul.addr %s130, 4
        %s132 = scalar_lea.vmem %s0, %s131
        %s133 = smul.u32 2, %s16
      $region20: #{cross_entropy.1} parent=15 // pred_fallthru
        _
      // Predicated region
      $region21: #{cross_entropy.1} parent=15 // pred_check
        %p134 = pneg %p70
      $region22: #{cross_entropy.1} parent=15 // pred_check_branch
        %136 = sbr.rel (%p134) target = $region24
      $region23: #{cross_entropy.1} parent=15 // pred_region
        %s137 = smul.u32 2, %s16
        %p138 = scmp.lt.s32.totalorder %s15, 1
        %s139 = scalar_select %p138, %s15, 1
        %p140 = scmp.lt.s32.totalorder %s137, 1
        %s141 = scalar_select %p140, %s137, 1
        %s142 = smul.addr %s139, 2
        %s143 = sadd.s32 %s141, %s142
        %s144 = scalar_lea.vmem %s1, %s143
        %s145 = smul.u32 2, %s16
      $region24: #{cross_entropy.1} parent=15 // pred_fallthru
        _
    $region16: #{cross_entropy.1} parent=5 // pred_fallthru
      _
    %p146 = scmp.le.s32.totalorder 1, %s8
    %p147 = scmp.lt.s32.totalorder %s8, 3
    %p148 = pnand %p146, %p147
    %p149 = pneg %p148
    // Predicated region
    $region25: #{cross_entropy.1} parent=5 // pred_check
      _
    $region26: #{cross_entropy.1} parent=5 // pred_check_branch
      %151 = sbr.rel (%p148) target = $region28
    $region27: #{cross_entropy.1} parent=5 // pred_region
      %s152 = ssub.s32 %s8, 1
      %s153 = smul.u32 2, %s18
      %p154 = scmp.lt.s32.totalorder %s17, 1
      %s155 = scalar_select %p154, %s17, 1
      %p156 = scmp.lt.s32.totalorder %s153, 1
      %s157 = scalar_select %p156, %s153, 1
      %s158 = smul.addr %s155, 2
      %s159 = sadd.s32 %s157, %s158
      %s160 = smul.addr %s159, 4
      %s161 = scalar_lea.vmem %s0, %s160
      %p162 = pneg %p48
      %p163 = pneg %p45
      %s164 = smul.u32 2, %s18
      %p165 = scmp.lt.s32.totalorder %s17, 1
      %s166 = scalar_select %p165, %s17, 1
      %p167 = scmp.lt.s32.totalorder %s164, 1
      %s168 = scalar_select %p167, %s164, 1
      %s169 = smul.addr %s166, 2
      %s170 = sadd.s32 %s168, %s169
      %s171 = scalar_lea.vmem %s1, %s170
      %p172 = pneg %p76
      %p173 = pneg %p73
      %p174 = pneg %p102
      %p175 = pneg %p99
      %p176 = scmp.lt.s32.totalorder %s17, 1
      %s177 = scalar_select %p176, %s17, 1
      %s178 = scalar_lea.vmem %s2, %s177
      %s179 = smul.u32 2, %s18
      %p180 = scmp.lt.s32.totalorder %s17, 1
      %s181 = scalar_select %p180, %s17, 1
      %p182 = scmp.lt.s32.totalorder %s179, 1
      %s183 = scalar_select %p182, %s179, 1
      %s184 = smul.addr %s181, 2
      %s185 = sadd.s32 %s183, %s184
      %s186 = smul.addr %s185, 4
      %s187 = scalar_lea.vmem %s0, %s186
      %s188 = smul.u32 2, %s18
      %s189 = smul.u32 2, %s18
      %p190 = scmp.lt.s32.totalorder %s17, 1
      %s191 = scalar_select %p190, %s17, 1
      %p192 = scmp.lt.s32.totalorder %s189, 1
      %s193 = scalar_select %p192, %s189, 1
      %s194 = smul.addr %s191, 2
      %s195 = sadd.s32 %s193, %s194
      %s196 = scalar_lea.vmem %s1, %s195
      %s197 = smul.u32 2, %s18
      %p198 = scmp.lt.s32.totalorder %s17, 1
      %s199 = scalar_select %p198, %s17, 1
      %s200 = scalar_lea.vmem %s2, %s199
      %p201 = scmp.eq.s32.totalorder %s18, 0
      // Predicated region
      $region29: #{cross_entropy.1} parent=27 // pred_check
        %p202 = pneg %p201
      $region30: #{cross_entropy.1} parent=27 // pred_check_branch
        %204 = sbr.rel (%p202) target = $region32
      $region31: #{cross_entropy.1} parent=27 // pred_region
        %v205 = vlaneseq
        %vm206 = vcmp.ge.s32.totalorder %v205, 0
        %vm207 = vcmp.lt.s32.totalorder %v205, 256
        %vm208 = vmand %vm206, %vm207
        %209 = vst.msk [vmem:[#allocation2] sm:$0x3] %vm208, 0.0
      $region32: #{cross_entropy.1} parent=27 // pred_fallthru
        _
      %v210 = vld [vmem:[%s187] sm:$0xff]
      %v211 = vld [vmem:[%s196] sm:$0x3]
      %213 = vst [vmem:[#allocation1] ss:$2 sm:$0xff] %v210
      %v214 = vld.sshfl [vmem:[#allocation1] sm:$0xff pattern:$0x75316420]
      %v215 = vld.sshfl [vmem:[#allocation1 + $0x8] sm:$0xff pattern:$0x75316420]
      %vm218 = vcmask 1043456
      %v219 = vsel %vm218, %v214, -inf
      %v220 = vrot.slane %v219, 4
      %v221 = vmax.f32 %v219, %v220
      %v222 = vrot.slane %v221, 2
      %v223 = vmax.f32 %v221, %v222
      %v224 = vrot.slane %v223, 1
      %v225 = vmax.f32 %v223, %v224
      %v226 = vsel %vm218, %v215, -inf
      %v227 = vrot.slane %v226, 4
      %v228 = vmax.f32 %v226, %v227
      %v229 = vrot.slane %v228, 2
      %v230 = vmax.f32 %v228, %v229
      %v231 = vrot.slane %v230, 1
      %v232 = vmax.f32 %v230, %v231
      %v235 = vrot.slane %v232, 4
      %v236 = vsel %vm218, %v225, %v235
      %v238 = vsub.f32 %v210, %v236
      %v239 = vmul.f32 %v238, 1.442695
      %v240 = vpow.pop %v239
      %242 = vst [vmem:[#allocation1] ss:$2 sm:$0xff] %v240
      %v243 = vld.sshfl [vmem:[#allocation1] sm:$0xff pattern:$0x75316420]
      %v244 = vld.sshfl [vmem:[#allocation1 + $0x8] sm:$0xff pattern:$0x75316420]
      %v247 = vsel %vm218, %v243, 0.0
      %v248 = vrot.slane %v247, 4
      %v249 = vadd.f32 %v247, %v248
      %v250 = vrot.slane %v249, 2
      %v251 = vadd.f32 %v249, %v250
      %v252 = vrot.slane %v251, 1
      %v253 = vadd.f32 %v251, %v252
      %v254 = vsel %vm218, %v244, 0.0
      %v255 = vrot.slane %v254, 4
      %v256 = vadd.f32 %v254, %v255
      %v257 = vrot.slane %v256, 2
      %v258 = vadd.f32 %v256, %v257
      %v259 = vrot.slane %v258, 1
      %v260 = vadd.f32 %v258, %v259
      %v261 = vlog2.pop %v253
      %v262 = vmul.f32 %v261, 0.6931472
      %v263 = vlog2.pop %v260
      %v264 = vmul.f32 %v263, 0.6931472
      %v265 = vlaneseq
      %v266 = vshrl.u32 %v265, 7
      %v267 = vperm.slane %v211, 0
      %v268 = vperm.slane %v211, 1
      %vm269 = vcmp.eq.s32.totalorder %v266, %v267
      %vm270 = vcmp.eq.s32.totalorder %v266, %v268
      %272 = vst [vmem:[#allocation1] ss:$2 sm:$0xff] %v238
      %v273 = vld.sshfl [vmem:[#allocation1] sm:$0xff pattern:$0x75316420]
      %v274 = vld.sshfl [vmem:[#allocation1 + $0x8] sm:$0xff pattern:$0x75316420]
      %v277 = vsel %vm269, %v273, 0.0
      %v278 = vsel %vm270, %v274, 0.0
      %v279 = vsel %vm218, %v277, 0.0
      %v280 = vrot.slane %v279, 4
      %v281 = vadd.f32 %v279, %v280
      %v282 = vrot.slane %v281, 2
      %v283 = vadd.f32 %v281, %v282
      %v284 = vrot.slane %v283, 1
      %v285 = vadd.f32 %v283, %v284
      %v286 = vsel %vm218, %v278, 0.0
      %v287 = vrot.slane %v286, 4
      %v288 = vadd.f32 %v286, %v287
      %v289 = vrot.slane %v288, 2
      %v290 = vadd.f32 %v288, %v289
      %v291 = vrot.slane %v290, 1
      %v292 = vadd.f32 %v290, %v291
      %v293 = vsub.f32 %v262, %v285
      %v294 = vsub.f32 %v264, %v292
      %s295 = smul.u32 %s18, 256
      %v296 = vlaneseq
      %v297 = vand.u32 %v296, 127
      %v298 = vadd.s32 %v297, 128
      %v299 = vstv %s295
      %v300 = vadd.s32 %v299, %v297
      %v301 = vadd.s32 %v299, %v298
      %v302 = vld [vmem:[#allocation2] sm:$0x3]
      %vm303 = vcmp.lt.s32.totalorder %v300, 256
      %vm304 = vcmp.lt.s32.totalorder %v301, 256
      %v305 = vsel %vm303, %v293, 0.0
      %v306 = vsel %vm304, %v294, 0.0
      %v309 = vrot.slane %v306, 7
      %vm310 = vcmask 1040384
      %v311 = vsel %vm310, %v305, %v309
      %v313 = vadd.f32 %v302, %v311
      %v314 = vlaneseq
      %vm315 = vcmp.ge.s32.totalorder %v314, 0
      %vm316 = vcmp.lt.s32.totalorder %v314, 256
      %vm317 = vmand %vm315, %vm316
      %318 = vst.msk [vmem:[#allocation2] sm:$0x3] %vm317, %v313
      // Predicated region
      $region33: #{cross_entropy.1} parent=27 // pred_check
        %p319 = pneg %p201
      $region34: #{cross_entropy.1} parent=27 // pred_check_branch
        %321 = sbr.rel (%p319) target = $region36
      $region35: #{cross_entropy.1} parent=27 // pred_region
        %v322 = vld [vmem:[#allocation2] sm:$0x3]
        %v324 = vperm.slane %v322, 0
        %v325 = vperm.slane %v322, 1
        %v328 = vsel %vm310, %v324, 0.0
        %v329 = vsel %vm310, %v325, 0.0
        %v330 = vadd.f32 %v328, %v329
        %331 = vadd.xlane.f32.xlu0 %v330
        %v332 = vpop.xlane.xlu0 %331
        %v333 = vrot.slane %v332, 4
        %v334 = vadd.f32 %v332, %v333
        %v335 = vrot.slane %v334, 2
        %v336 = vadd.f32 %v334, %v335
        %v337 = vrot.slane %v336, 1
        %v338 = vadd.f32 %v336, %v337
        %s339 = vtos %v338
        %v340 = vstv %s339
        %341 = vst [vmem:[%s200] sm:$0x1] %v340
      $region36: #{cross_entropy.1} parent=27 // pred_fallthru
        _
      %p342 = scmp.lt.s32.totalorder %s17, 1
      %s343 = scalar_select %p342, %s17, 1
      %s344 = scalar_lea.vmem %s2, %s343
      // Predicated region
      $region37: #{cross_entropy.1} parent=27 // pred_check
        %p345 = pneg %p99
      $region38: #{cross_entropy.1} parent=27 // pred_check_branch
        %347 = sbr.rel (%p345) target = $region40
      $region39: #{cross_entropy.1} parent=27 // pred_region
        _
      $region40: #{cross_entropy.1} parent=27 // pred_fallthru
        _
    $region28: #{cross_entropy.1} parent=5 // pred_fallthru
      _
    %p348 = scmp.le.s32.totalorder 2, %s8
    // Predicated region
    $region41: #{cross_entropy.1} parent=5 // pred_check
      %p349 = pneg %p348
    $region42: #{cross_entropy.1} parent=5 // pred_check_branch
      %351 = sbr.rel (%p349) target = $region44
    $region43: #{cross_entropy.1} parent=5 // pred_region
      %s352 = ssub.s32 %s8, 2
      // Predicated region
      $region45: #{cross_entropy.1} parent=43 // pred_check
        %p353 = pneg %p105
      $region46: #{cross_entropy.1} parent=43 // pred_check_branch
        %355 = sbr.rel (%p353) target = $region48
      $region47: #{cross_entropy.1} parent=43 // pred_region
        %p356 = scmp.lt.s32.totalorder %s19, 1
        %s357 = scalar_select %p356, %s19, 1
        %s358 = scalar_lea.vmem %s2, %s357
      $region48: #{cross_entropy.1} parent=43 // pred_fallthru
        _
    $region44: #{cross_entropy.1} parent=5 // pred_fallthru
      _
  $region6: #{cross_entropy.1} parent=0 // loop_footer
    %s12 = sadd.s32 1, %s8
  $region7: #{cross_entropy.1} parent=0 // loop_footer_branch
    %7 = sbr.rel target = $region3
  $region8: #{cross_entropy.1} parent=0 // loop_exit
    _

</llo_original>
